<compile_context>
chip_gen: v7x
topology: tpu7x:2x2x1
jax: 0.10.0
libtpu: 0.0.40
codegen_flags: <defaults>
</compile_context>

<pallas_src>
import jax
import jax.numpy as jnp
from jax.experimental import pallas as pl
from jax.experimental.pallas import tpu as pltpu


def _round_up(x, m):
    return (x + m - 1) // m * m


# ---------------------------------------------------------------------------
# Kernel: one grid step == one decode timestep for the whole batch.
# ---------------------------------------------------------------------------
def _gru_decode_kernel(tok_ref, emb_ref, h0_ref, wg_ref, bg_ref, wo_ref, bo_ref,
                       logp_ref, hout_ref, h_scr):
    t = pl.program_id(0)
    Bp, Hp = h_scr.shape
    Vp = emb_ref.shape[0]

    # Load the initial hidden state into the carried VMEM scratch once.
    @pl.when(t == 0)
    def _():
        h_scr[...] = h0_ref[...]

    # --- Embedding gather as a one-hot MXU matmul: (Bp,Vp) @ (Vp,Hp) -------
    tok = tok_ref[0]                                            # (Bp, 1) int32
    lane = jax.lax.broadcasted_iota(jnp.int32, (Bp, Vp), 1)     # (Bp, Vp)
    onehot = (lane == tok).astype(jnp.float32)                  # (Bp, Vp)
    embedded = jnp.dot(onehot, emb_ref[...],
                       preferred_element_type=jnp.float32)      # (Bp, Hp)

    x = jnp.maximum(embedded, 0.0)                              # relu(embedded)
    h = h_scr[...]                                              # (Bp, Hp)

    # --- Fused GRU gate matmul: [x | h] @ [[Wir Wiz Win  0 ],
    #                                       [Whr Whz  0  Whn]] ------------
    xh = jnp.concatenate([x, h], axis=1)                        # (Bp, 2Hp)
    g = jnp.dot(xh, wg_ref[...],
                preferred_element_type=jnp.float32) + bg_ref[...]   # (Bp, 4Hp)

    r = jax.nn.sigmoid(g[:, 0 * Hp:1 * Hp])                     # r gate
    z = jax.nn.sigmoid(g[:, 1 * Hp:2 * Hp])                     # z gate
    n = jnp.tanh(g[:, 2 * Hp:3 * Hp] + r * g[:, 3 * Hp:4 * Hp]) # n gate
    h_new = (1.0 - z) * n + z * h                               # (Bp, Hp)

    h_scr[...] = h_new
    hout_ref[...] = h_new                                       # VMEM-resident output

    # --- Linear + log_softmax (padded vocab lanes carry -1e30 bias) --------
    logits = jnp.dot(h_new, wo_ref[...],
                     preferred_element_type=jnp.float32) + bo_ref[...]  # (Bp, Vp)
    m = jnp.max(logits, axis=-1, keepdims=True)
    shifted = logits - m
    lse = jnp.log(jnp.sum(jnp.exp(shifted), axis=-1, keepdims=True))
    logp_ref[...] = (shifted - lse).reshape(1, Bp, Vp)


# ---------------------------------------------------------------------------
# Host-side parameter preparation: fuse + pad to 128-lane multiples (one-time).
# ---------------------------------------------------------------------------
def prepare_params(params, hidden_size, output_size):
    H, V = hidden_size, output_size
    Hp, Vp = _round_up(H, 128), _round_up(V, 128)

    emb = params["embedding"].astype(jnp.float32)     # (V, H)
    w_ih = params["w_ih"].astype(jnp.float32)         # (H, 3H) gates r,z,n
    w_hh = params["w_hh"].astype(jnp.float32)         # (H, 3H)
    b_ih = params["b_ih"].reshape(-1).astype(jnp.float32)
    b_hh = params["b_hh"].reshape(-1).astype(jnp.float32)
    w_out = params["w_out"].astype(jnp.float32)       # (H, V)
    b_out = params["b_out"].reshape(-1).astype(jnp.float32)

    emb_p = jnp.zeros((Vp, Hp), jnp.float32).at[:V, :H].set(emb)

    # Fused gate weight (2Hp, 4Hp): columns = [r | z | gi_n | gh_n]
    wg = jnp.zeros((2 * Hp, 4 * Hp), jnp.float32)
    wg = wg.at[0:H,        0 * Hp:0 * Hp + H].set(w_ih[:, 0:H])          # r | x
    wg = wg.at[Hp:Hp + H,  0 * Hp:0 * Hp + H].set(w_hh[:, 0:H])          # r | h
    wg = wg.at[0:H,        1 * Hp:1 * Hp + H].set(w_ih[:, H:2 * H])      # z | x
    wg = wg.at[Hp:Hp + H,  1 * Hp:1 * Hp + H].set(w_hh[:, H:2 * H])      # z | h
    wg = wg.at[0:H,        2 * Hp:2 * Hp + H].set(w_ih[:, 2 * H:3 * H])  # n | x
    wg = wg.at[Hp:Hp + H,  3 * Hp:3 * Hp + H].set(w_hh[:, 2 * H:3 * H])  # n | h

    bg = jnp.zeros((1, 4 * Hp), jnp.float32)
    bg = bg.at[0, 0 * Hp:0 * Hp + H].set(b_ih[0:H] + b_hh[0:H])          # r
    bg = bg.at[0, 1 * Hp:1 * Hp + H].set(b_ih[H:2 * H] + b_hh[H:2 * H])  # z
    bg = bg.at[0, 2 * Hp:2 * Hp + H].set(b_ih[2 * H:3 * H])              # b_in
    bg = bg.at[0, 3 * Hp:3 * Hp + H].set(b_hh[2 * H:3 * H])              # b_hn

    wo_p = jnp.zeros((Hp, Vp), jnp.float32).at[:H, :V].set(w_out)
    bo_p = jnp.full((1, Vp), -1e30, jnp.float32).at[0, :V].set(b_out)

    return {"emb": emb_p, "wg": wg, "bg": bg, "wo": wo_p, "bo": bo_p,
            "H": H, "V": V, "Hp": Hp, "Vp": Vp}


# ---------------------------------------------------------------------------
# Fused multi-step, batched decode (single pallas_call).
# ---------------------------------------------------------------------------
def gru_decode(tokens, h0, prep):
    """tokens: int32 (T, B) teacher-forced token ids; h0: float32 (B, H).
    Returns (log_probs (T, B, V), final hidden (B, H))."""
    T, B = tokens.shape
    H, V, Hp, Vp = prep["H"], prep["V"], prep["Hp"], prep["Vp"]
    Bp = _round_up(max(B, 8), 8)

    tok_p = jnp.zeros((T, Bp, 1), jnp.int32).at[:, :B, 0].set(
        tokens.astype(jnp.int32))
    h0_p = jnp.zeros((Bp, Hp), jnp.float32).at[:B, :H].set(
        h0.astype(jnp.float32))

    grid_spec = pltpu.PrefetchScalarGridSpec(
        num_scalar_prefetch=0,
        grid=(T,),
        in_specs=[
            pl.BlockSpec((1, Bp, 1), lambda t: (t, 0, 0)),      # tokens (per step)
            pl.BlockSpec((Vp, Hp), lambda t: (0, 0)),           # embedding (resident)
            pl.BlockSpec((Bp, Hp), lambda t: (0, 0)),           # initial hidden
            pl.BlockSpec((2 * Hp, 4 * Hp), lambda t: (0, 0)),   # fused gate weights
            pl.BlockSpec((1, 4 * Hp), lambda t: (0, 0)),        # fused gate bias
            pl.BlockSpec((Hp, Vp), lambda t: (0, 0)),           # output weight
            pl.BlockSpec((1, Vp), lambda t: (0, 0)),            # output bias (-inf pad)
        ],
        out_specs=[
            pl.BlockSpec((1, Bp, Vp), lambda t: (t, 0, 0)),     # log-probs per step
            pl.BlockSpec((Bp, Hp), lambda t: (0, 0)),           # final hidden
        ],
        scratch_shapes=[pltpu.VMEM((Bp, Hp), jnp.float32)],     # carried hidden
    )

    logp_p, h_p = pl.pallas_call(
        _gru_decode_kernel,
        grid_spec=grid_spec,
        out_shape=(
            jax.ShapeDtypeStruct((T, Bp, Vp), jnp.float32),
            jax.ShapeDtypeStruct((Bp, Hp), jnp.float32),
        ),
        compiler_params=pltpu.CompilerParams(
            dimension_semantics=("arbitrary",)),   # sequential time carry
    )(tok_p, prep["emb"], h0_p, prep["wg"], prep["bg"], prep["wo"], prep["bo"])

    return logp_p[:, :B, :V], h_p[:B, :H]


def decoder_rnn_forward(token, hidden, prep):
    """Original module API: token (1,1) int32, hidden (1,1,H).
    Returns (log_probs (1,V), hidden (1,1,H))."""
    H = prep["H"]
    tokens = token.reshape(1, 1).astype(jnp.int32)     # (T=1, B=1)
    h0 = hidden.reshape(1, H).astype(jnp.float32)
    logp, h_new = gru_decode(tokens, h0, prep)
    return logp[0], h_new.reshape(1, 1, H)


# ---------------------------------------------------------------------------
# Deterministic synthetic parameters (shapes match nn.Embedding / nn.GRU(H,H)
# / nn.Linear(H,V); GRU & Linear weights stored pre-transposed for x @ W).
# ---------------------------------------------------------------------------
def init_params(key, output_size, hidden_size):
    H, V = hidden_size, output_size
    ks = jax.random.split(key, 7)
    s = 1.0 / jnp.sqrt(H)
    u = lambda k, shape: jax.random.uniform(k, shape, jnp.float32, -s, s)
    return {
        "embedding": jax.random.normal(ks[0], (V, H), jnp.float32),
        "w_ih": u(ks[1], (H, 3 * H)),   # torch (3H,H) transposed; gates r,z,n
        "w_hh": u(ks[2], (H, 3 * H)),
        "b_ih": u(ks[3], (1, 3 * H)),
        "b_hh": u(ks[4], (1, 3 * H)),
        "w_out": u(ks[5], (H, V)),      # torch (V,H) transposed
        "b_out": u(ks[6], (1, V)),
    }


def reference_decode(tokens, h0, params):
    """Pure-JAX reference of the (fixed) PyTorch forward, scanned over time."""
    emb, w_ih, w_hh = params["embedding"], params["w_ih"], params["w_hh"]
    b_ih, b_hh = params["b_ih"], params["b_hh"]
    w_out, b_out = params["w_out"], params["b_out"]
    H = h0.shape[-1]

    def step(h, tok):
        x = jnp.maximum(emb[tok], 0.0)
        gi = x @ w_ih + b_ih
        gh = h @ w_hh + b_hh
        r = jax.nn.sigmoid(gi[:, :H] + gh[:, :H])
        z = jax.nn.sigmoid(gi[:, H:2 * H] + gh[:, H:2 * H])
        n = jnp.tanh(gi[:, 2 * H:] + r * gh[:, 2 * H:])
        h_new = (1.0 - z) * n + z * h
        logits = h_new @ w_out + b_out
        return h_new, jax.nn.log_softmax(logits, axis=-1)

    h_final, logps = jax.lax.scan(step, h0, tokens)
    return logps, h_final


if __name__ == "__main__":
    hidden_size = 32
    output_size = 64     # vocab size
    T, B = 8, 8          # fused decode steps x batched decode streams

    key = jax.random.PRNGKey(0)
    k_params, k_tok, k_hid = jax.random.split(key, 3)

    params = init_params(k_params, output_size, hidden_size)
    prep = prepare_params(params, hidden_size, output_size)

    tokens = jax.random.randint(k_tok, (T, B), 0, output_size, dtype=jnp.int32)
    h0 = jax.random.normal(k_hid, (B, hidden_size), jnp.float32)

    log_probs, h_final = gru_decode(tokens, h0, prep)
    jax.block_until_ready((log_probs, h_final))

    assert log_probs.shape == (T, B, output_size)
    assert h_final.shape == (B, hidden_size)
    # log_softmax sanity: probabilities sum to ~1 at every (t, b)
    sums = jnp.sum(jnp.exp(log_probs), axis=-1)
    assert bool(jnp.all(jnp.abs(sums - 1.0) < 1e-3))

    # Cross-check against the pure-JAX reference of the original forward.
    ref_logp, ref_h = reference_decode(tokens, h0, params)
    assert float(jnp.max(jnp.abs(log_probs - ref_logp))) < 5e-2
    assert float(jnp.max(jnp.abs(h_final - ref_h))) < 5e-2

    # Original single-step (batch=1) module API, routed through the same kernel.
    tok1 = tokens[:1, :1]
    hid1 = h0[:1].reshape(1, 1, hidden_size)
    out1, hid1_new = decoder_rnn_forward(tok1, hid1, prep)
    jax.block_until_ready((out1, hid1_new))
    assert out1.shape == (1, output_size)
    assert hid1_new.shape == (1, 1, hidden_size)

    print("KERNEL_OK")
</pallas_src>

<mosaic_0001>
module attributes {stable_mosaic.version = 11 : i64} {
  func.func @_gru_decode_kernel(%arg0: i32, %arg1: memref<1x8x1xi32, #tpu.memory_space<vmem>>, %arg2: memref<128x128xf32, #tpu.memory_space<vmem>>, %arg3: memref<8x128xf32, #tpu.memory_space<vmem>>, %arg4: memref<256x512xf32, #tpu.memory_space<vmem>>, %arg5: memref<1x512xf32, #tpu.memory_space<vmem>>, %arg6: memref<128x128xf32, #tpu.memory_space<vmem>>, %arg7: memref<1x128xf32, #tpu.memory_space<vmem>>, %arg8: memref<1x8x128xf32, #tpu.memory_space<vmem>>, %arg9: memref<8x128xf32, #tpu.memory_space<vmem>>, %arg10: memref<8x128xf32, #tpu.memory_space<vmem>>) attributes {dimension_semantics = [#tpu.dimension_semantics<arbitrary>], iteration_bounds = array<i64: 8>, scalar_prefetch = 0 : i64, scratch_operands = 1 : i64, tpu.core_type = #tpu.core_type<tc>, window_params = [{transform_indices = @transform_0, window_bounds = array<i64: 1, 8, 1>}, {pipeline_mode = #tpu.pipeline_mode<synchronous>, transform_indices = @transform_1, window_bounds = array<i64: 128, 128>}, {pipeline_mode = #tpu.pipeline_mode<synchronous>, transform_indices = @transform_2, window_bounds = array<i64: 8, 128>}, {pipeline_mode = #tpu.pipeline_mode<synchronous>, transform_indices = @transform_3, window_bounds = array<i64: 256, 512>}, {pipeline_mode = #tpu.pipeline_mode<synchronous>, transform_indices = @transform_4, window_bounds = array<i64: 1, 512>}, {pipeline_mode = #tpu.pipeline_mode<synchronous>, transform_indices = @transform_5, window_bounds = array<i64: 128, 128>}, {pipeline_mode = #tpu.pipeline_mode<synchronous>, transform_indices = @transform_6, window_bounds = array<i64: 1, 128>}, {transform_indices = @transform_7, window_bounds = array<i64: 1, 8, 128>}, {pipeline_mode = #tpu.pipeline_mode<synchronous>, transform_indices = @transform_8, window_bounds = array<i64: 8, 128>}]} {
    %c0_i32 = arith.constant 0 : i32
    %0 = arith.cmpi eq, %arg0, %c0_i32 : i32
    %1 = arith.extui %0 : i1 to i32
    %c0_i32_0 = arith.constant 0 : i32
    %2 = arith.cmpi ne, %1, %c0_i32_0 : i32
    scf.if %2 {
      %c0_30 = arith.constant 0 : index
      %c0_31 = arith.constant 0 : index
      %62 = vector.load %arg3[%c0_30, %c0_31] : memref<8x128xf32, #tpu.memory_space<vmem>>, vector<8x128xf32>
      %c0_32 = arith.constant 0 : index
      %c0_33 = arith.constant 0 : index
      %63 = vector.load %arg10[%c0_32, %c0_33] : memref<8x128xf32, #tpu.memory_space<vmem>>, vector<8x128xf32>
      tpu.vector_store %arg10[%c0_32, %c0_33], %62 {strides = array<i32>} : memref<8x128xf32, #tpu.memory_space<vmem>>, vector<8x128xf32>,
    } else {
    }
    %c0 = arith.constant 0 : index
    %c0_1 = arith.constant 0 : index
    %c0_2 = arith.constant 0 : index
    %3 = vector.load %arg1[%c0, %c0_1, %c0_2] : memref<1x8x1xi32, #tpu.memory_space<vmem>>, vector<1x8x1xi32>
    %4 = vector.shape_cast %3 : vector<1x8x1xi32> to vector<8x1xi32>
    %5 = tpu.iota {dimensions = array<i32: 1>} : vector<8x128xi32>
    %6 = vector.broadcast %4 : vector<8x1xi32> to vector<8x128xi32>
    %7 = arith.cmpi eq, %5, %6 : vector<8x128xi32>
    %8 = arith.extui %7 : vector<8x128xi1> to vector<8x128xi32>
    %9 = arith.sitofp %8 : vector<8x128xi32> to vector<8x128xf32>
    %c0_3 = arith.constant 0 : index
    %c0_4 = arith.constant 0 : index
    %10 = vector.load %arg2[%c0_3, %c0_4] : memref<128x128xf32, #tpu.memory_space<vmem>>, vector<128x128xf32>
    %cst = arith.constant dense<0.000000e+00> : vector<8x128xf32>
    %11 = tpu.matmul %9, %10, %cst {dimension_numbers = #tpu.dot_dimension_numbers<[1], [0], [0], [1], [0, 0, 1, 1], [], []>} : vector<8x128xf32>, vector<128x128xf32>, vector<8x128xf32> -> vector<8x128xf32>
    %cst_5 = arith.constant 0.000000e+00 : f32
    %12 = vector.broadcast %cst_5 : f32 to vector<8x128xf32>
    %13 = arith.maximumf %11, %12 : vector<8x128xf32>
    %c0_6 = arith.constant 0 : index
    %c0_7 = arith.constant 0 : index
    %14 = vector.load %arg10[%c0_6, %c0_7] : memref<8x128xf32, #tpu.memory_space<vmem>>, vector<8x128xf32>
    %15 = tpu.concatenate %13, %14 in 1 : vector<8x128xf32>, vector<8x128xf32> -> vector<8x256xf32>
    %c0_8 = arith.constant 0 : index
    %c0_9 = arith.constant 0 : index
    %16 = vector.load %arg4[%c0_8, %c0_9] : memref<256x512xf32, #tpu.memory_space<vmem>>, vector<256x512xf32>
    %cst_10 = arith.constant dense<0.000000e+00> : vector<8x512xf32>
    %17 = tpu.matmul %15, %16, %cst_10 {dimension_numbers = #tpu.dot_dimension_numbers<[1], [0], [0], [1], [0, 0, 1, 1], [], []>} : vector<8x256xf32>, vector<256x512xf32>, vector<8x512xf32> -> vector<8x512xf32>
    %c0_11 = arith.constant 0 : index
    %c0_12 = arith.constant 0 : index
    %18 = vector.load %arg5[%c0_11, %c0_12] : memref<1x512xf32, #tpu.memory_space<vmem>>, vector<1x512xf32>
    %19 = vector.broadcast %18 : vector<1x512xf32> to vector<8x512xf32>
    %20 = arith.addf %17, %19 : vector<8x512xf32>
    %21 = vector.extract_strided_slice %20 {offsets = [0, 0], sizes = [8, 128], strides = [1, 1]} : vector<8x512xf32> to vector<8x128xf32>
    %22 = arith.negf %21 : vector<8x128xf32>
    %23 = math.exp %22 : vector<8x128xf32>
    %cst_13 = arith.constant 1.000000e+00 : f32
    %24 = vector.broadcast %cst_13 : f32 to vector<8x128xf32>
    %25 = arith.addf %24, %23 : vector<8x128xf32>
    %26 = arith.divf %24, %25 : vector<8x128xf32>
    %27 = vector.extract_strided_slice %20 {offsets = [0, 128], sizes = [8, 128], strides = [1, 1]} : vector<8x512xf32> to vector<8x128xf32>
    %28 = arith.negf %27 : vector<8x128xf32>
    %29 = math.exp %28 : vector<8x128xf32>
    %cst_14 = arith.constant 1.000000e+00 : f32
    %30 = vector.broadcast %cst_14 : f32 to vector<8x128xf32>
    %31 = arith.addf %30, %29 : vector<8x128xf32>
    %32 = arith.divf %30, %31 : vector<8x128xf32>
    %33 = vector.extract_strided_slice %20 {offsets = [0, 256], sizes = [8, 128], strides = [1, 1]} : vector<8x512xf32> to vector<8x128xf32>
    %34 = vector.extract_strided_slice %20 {offsets = [0, 384], sizes = [8, 128], strides = [1, 1]} : vector<8x512xf32> to vector<8x128xf32>
    %35 = arith.mulf %26, %34 : vector<8x128xf32>
    %36 = arith.addf %33, %35 : vector<8x128xf32>
    %37 = math.tanh %36 : vector<8x128xf32>
    %cst_15 = arith.constant 1.000000e+00 : f32
    %38 = vector.broadcast %cst_15 : f32 to vector<8x128xf32>
    %39 = arith.subf %38, %32 : vector<8x128xf32>
    %40 = arith.mulf %39, %37 : vector<8x128xf32>
    %41 = arith.mulf %32, %14 : vector<8x128xf32>
    %42 = arith.addf %40, %41 : vector<8x128xf32>
    %c0_16 = arith.constant 0 : index
    %c0_17 = arith.constant 0 : index
    %43 = vector.load %arg10[%c0_16, %c0_17] : memref<8x128xf32, #tpu.memory_space<vmem>>, vector<8x128xf32>
    tpu.vector_store %arg10[%c0_16, %c0_17], %42 {strides = array<i32>} : memref<8x128xf32, #tpu.memory_space<vmem>>, vector<8x128xf32>,
    %c0_18 = arith.constant 0 : index
    %c0_19 = arith.constant 0 : index
    %44 = vector.load %arg9[%c0_18, %c0_19] : memref<8x128xf32, #tpu.memory_space<vmem>>, vector<8x128xf32>
    tpu.vector_store %arg9[%c0_18, %c0_19], %42 {strides = array<i32>} : memref<8x128xf32, #tpu.memory_space<vmem>>, vector<8x128xf32>,
    %c0_20 = arith.constant 0 : index
    %c0_21 = arith.constant 0 : index
    %45 = vector.load %arg6[%c0_20, %c0_21] : memref<128x128xf32, #tpu.memory_space<vmem>>, vector<128x128xf32>
    %cst_22 = arith.constant dense<0.000000e+00> : vector<8x128xf32>
    %46 = tpu.matmul %42, %45, %cst_22 {dimension_numbers = #tpu.dot_dimension_numbers<[1], [0], [0], [1], [0, 0, 1, 1], [], []>} : vector<8x128xf32>, vector<128x128xf32>, vector<8x128xf32> -> vector<8x128xf32>
    %c0_23 = arith.constant 0 : index
    %c0_24 = arith.constant 0 : index
    %47 = vector.load %arg7[%c0_23, %c0_24] : memref<1x128xf32, #tpu.memory_space<vmem>>, vector<1x128xf32>
    %48 = vector.broadcast %47 : vector<1x128xf32> to vector<8x128xf32>
    %49 = arith.addf %46, %48 : vector<8x128xf32>
    %cst_25 = arith.constant dense<0xFF800000> : vector<8xf32>
    %50 = vector.multi_reduction <maximumf>, %49, %cst_25 [1] : vector<8x128xf32> to vector<8xf32>
    %51 = vector.shape_cast %50 : vector<8xf32> to vector<8x1xf32>
    %52 = vector.broadcast %51 : vector<8x1xf32> to vector<8x128xf32>
    %53 = arith.subf %49, %52 : vector<8x128xf32>
    %54 = math.exp %53 : vector<8x128xf32>
    %cst_26 = arith.constant dense<0.000000e+00> : vector<8xf32>
    %55 = vector.multi_reduction <add>, %54, %cst_26 [1] : vector<8x128xf32> to vector<8xf32>
    %56 = vector.shape_cast %55 : vector<8xf32> to vector<8x1xf32>
    %57 = math.log %56 : vector<8x1xf32>
    %58 = vector.broadcast %57 : vector<8x1xf32> to vector<8x128xf32>
    %59 = arith.subf %53, %58 : vector<8x128xf32>
    %60 = vector.shape_cast %59 : vector<8x128xf32> to vector<1x8x128xf32>
    %c0_27 = arith.constant 0 : index
    %c0_28 = arith.constant 0 : index
    %c0_29 = arith.constant 0 : index
    %61 = vector.load %arg8[%c0_27, %c0_28, %c0_29] : memref<1x8x128xf32, #tpu.memory_space<vmem>>, vector<1x8x128xf32>
    tpu.vector_store %arg8[%c0_27, %c0_28, %c0_29], %60 {strides = array<i32>} : memref<1x8x128xf32, #tpu.memory_space<vmem>>, vector<1x8x128xf32>,
    return
  }
  func.func @transform_0(%arg0: i32) -> (i32, i32, i32) {
    %c0_i32 = arith.constant 0 : i32
    %c0_i32_0 = arith.constant 0 : i32
    %c0_i32_1 = arith.constant 0 : i32
    return %arg0, %c0_i32, %c0_i32_0 : i32, i32, i32
  }
  func.func @transform_1(%arg0: i32) -> (i32, i32) {
    %c0_i32 = arith.constant 0 : i32
    %c0_i32_0 = arith.constant 0 : i32
    %c0_i32_1 = arith.constant 0 : i32
    return %c0_i32, %c0_i32_0 : i32, i32
  }
  func.func @transform_2(%arg0: i32) -> (i32, i32) {
    %c0_i32 = arith.constant 0 : i32
    %c0_i32_0 = arith.constant 0 : i32
    %c0_i32_1 = arith.constant 0 : i32
    return %c0_i32, %c0_i32_0 : i32, i32
  }
  func.func @transform_3(%arg0: i32) -> (i32, i32) {
    %c0_i32 = arith.constant 0 : i32
    %c0_i32_0 = arith.constant 0 : i32
    %c0_i32_1 = arith.constant 0 : i32
    return %c0_i32, %c0_i32_0 : i32, i32
  }
  func.func @transform_4(%arg0: i32) -> (i32, i32) {
    %c0_i32 = arith.constant 0 : i32
    %c0_i32_0 = arith.constant 0 : i32
    %c0_i32_1 = arith.constant 0 : i32
    return %c0_i32, %c0_i32_0 : i32, i32
  }
  func.func @transform_5(%arg0: i32) -> (i32, i32) {
    %c0_i32 = arith.constant 0 : i32
    %c0_i32_0 = arith.constant 0 : i32
    %c0_i32_1 = arith.constant 0 : i32
    return %c0_i32, %c0_i32_0 : i32, i32
  }
  func.func @transform_6(%arg0: i32) -> (i32, i32) {
    %c0_i32 = arith.constant 0 : i32
    %c0_i32_0 = arith.constant 0 : i32
    %c0_i32_1 = arith.constant 0 : i32
    return %c0_i32, %c0_i32_0 : i32, i32
  }
  func.func @transform_7(%arg0: i32) -> (i32, i32, i32) {
    %c0_i32 = arith.constant 0 : i32
    %c0_i32_0 = arith.constant 0 : i32
    %c0_i32_1 = arith.constant 0 : i32
    return %arg0, %c0_i32, %c0_i32_0 : i32, i32, i32
  }
  func.func @transform_8(%arg0: i32) -> (i32, i32) {
    %c0_i32 = arith.constant 0 : i32
    %c0_i32_0 = arith.constant 0 : i32
    %c0_i32_1 = arith.constant 0 : i32
    return %c0_i32, %c0_i32_0 : i32, i32
  }
}

</mosaic_0001>

<llo_original>
// kernel: tpu_custom_call.1
$region0: #{tpu_custom_call.1}
  #allocation0 [shape = 'u32[]', space=smem, size = 0x4, offset = 0x4, fixed_abs, tag = 'smem constant byte address 0x4 - core index']
  #allocation1 [shape = 'u32[144,128]{1,0:T(1,128)}', space=vmem, size = 0x12000, scoped, tag = 'internal scratch']
  #allocation2 [shape = 'f32[8,128]{1,0:T(8,128)}', space=vmem, size = 0x1000, scoped, tag = 'scratch operand']
  %s0 = inlined_call_operand.vmem [shape: s32[8,8,1], index: 0, kind: input, shape index: {}]
  %s1 = inlined_call_operand.hbm [shape: f32[128,128], index: 1, kind: input, shape index: {}]
  %s2 = inlined_call_operand.vmem [shape: f32[8,128], index: 2, kind: input, shape index: {}]
  %s3 = inlined_call_operand.hbm [shape: f32[256,512], index: 3, kind: input, shape index: {}]
  %s4 = inlined_call_operand.vmem [shape: f32[1,512], index: 4, kind: input, shape index: {}]
  %s5 = inlined_call_operand.hbm [shape: f32[128,128], index: 5, kind: input, shape index: {}]
  %s6 = inlined_call_operand.vmem [shape: f32[1,128], index: 6, kind: input, shape index: {}]
  %s7 = inlined_call_operand.hbm [shape: f32[8,8,128], index: 7, kind: output, shape index: {0}]
  %s8 = inlined_call_operand.hbm [shape: f32[8,128], index: 8, kind: output, shape index: {1}]
  %9 = xla_tuple %s7, %s8
  %s10 = sld [smem:[#allocation0]]
  $region85: #{tpu_custom_call.1} parent=0
    _
  %s12 = ssub.s32 1, %s10
  %s13 = scalar_select 0, %s12, %s10
  $region1: #{tpu_custom_call.1} parent=0
    #allocation3 [shape = 'u8[65536]{0}', space=vmem, size = 0x10000, scoped, tag = 'input window, operand 1, single buffered']
    #allocation4 [shape = 's32[2]{0}', space=sflag, size = 0x8, scoped, tag = 'scoped memory for tpu_custom_call.1']
    #allocation5 [shape = 's32[2]{0}', space=sflag, size = 0x8, scoped, tag = 'scoped memory for tpu_custom_call.1']
    #allocation6 [shape = 'u8[524288]{0}', space=vmem, size = 0x80000, scoped, tag = 'input window, operand 3, single buffered']
    #allocation7 [shape = 's32[1]{0}', space=sflag, size = 0x4, scoped, tag = 'scoped memory for tpu_custom_call.1']
    #allocation8 [shape = 'u8[65536]{0}', space=vmem, size = 0x10000, scoped, tag = 'input window, operand 5, single buffered']
    #allocation9 [shape = 'u8[8192]{0}', space=vmem, size = 0x2000, scoped, tag = 'output window, operand 0']
    #allocation10 [shape = 'u8[4096]{0}', space=vmem, size = 0x1000, scoped, tag = 'output window, operand 1, single buffered']
    #allocation11 [shape = 's32[1]{0}', space=sflag, size = 0x4, scoped, tag = 'scoped memory for tpu_custom_call.1']
    %14 = vsyncpa [#allocation4], 0
    %15 = vsyncpa [#allocation7], 0
    %16 = vsyncpa [#allocation5], 0
    %s17 = scalar_lea.sflag [#allocation5], 1
    %18 = vsyncpa %s17, 0
    %19 = vsyncpa [#allocation11], 0
    loop: start=0, step=1, limit=10
    $region2: #{tpu_custom_call.1} parent=1 // loop_pre_header
      _
    $region3: #{tpu_custom_call.1} parent=1 // loop_header
      %s21 = sphi 0, %s25
      %p22 = scmp.ge.s32.totalorder %s21, 10
      %s31 = sphi 0, %s33
      %s34 = sphi 0, %s31
      %s35 = sphi 0, %s34
      %s51 = sphi 0, %s35
      %s55 = sphi 0, %s55
      %s57 = sphi 0, %s55
      %s58 = sphi 0, %s57
      %s72 = sphi 0, %s58
      %s76 = sphi 0, %s76
      %s78 = sphi 0, %s76
      %s79 = sphi 0, %s78
      %s93 = sphi 0, %s79
      %s97 = sphi 0, %s97
      %s99 = sphi 0, %s97
      %s100 = sphi 0, %s99
      %s114 = sphi 0, %s100
      %s118 = sphi 0, %s118
      %s120 = sphi 0, %s118
      %s121 = sphi 0, %s120
      %s135 = sphi 0, %s121
      %s139 = sphi 0, %s139
      %s141 = sphi 0, %s139
      %s142 = sphi 0, %s141
      %s156 = sphi 0, %s142
      %s160 = sphi 0, %s160
      %s162 = sphi 0, %s160
      %s163 = sphi 0, %s162
      %s177 = sphi 0, %s163
      %s183 = sphi 0, %s185
      %s186 = sphi 0, %s183
      %s187 = sphi 0, %s186
      %s203 = sphi 0, %s187
      %s207 = sphi 0, %s207
      %s209 = sphi 0, %s207
      %s210 = sphi 0, %s209
      %s224 = sphi 0, %s210
    $region4: #{tpu_custom_call.1} parent=1 // loop_header_branch
      %24 = sbr.rel (%p22) target = $region8
    $region5: #{tpu_custom_call.1} parent=1 // loop_body
      %s26 = ssub.s32 %s21, 1
      %s27 = ssub.s32 %s21, 2
      %s28 = sadd.s32 %s21, 1
      %s29 = ssub.s32 %s21, %s28
      %p30 = scmp.eq.s32.totalorder %s29, 0
      %s32 = sadd.s32 %s31, 1
      %s33 = scalar_select %p30, %s31, %s32
      %p36 = pneg %p30
      %p37 = scmp.eq.s32.totalorder %s21, 7
      %p38 = por %p36, %p37
      %p39 = scmp.ne.s32.totalorder %s31, %s34
      %p40 = scmp.eq.s32.totalorder %s21, 0
      %p41 = por %p39, %p40
      %p42 = scmp.ne.s32.totalorder %s31, %s34
      %p43 = scmp.eq.s32.totalorder %s26, 7
      %p44 = por %p42, %p43
      %p45 = scmp.ne.s32.totalorder %s34, %s35
      %p46 = scmp.eq.s32.totalorder %s26, 0
      %p47 = por %p45, %p46
      %p48 = scmp.ne.s32.totalorder %s34, %s35
      %p49 = scmp.eq.s32.totalorder %s27, 7
      %p50 = por %p48, %p49
      %p52 = scmp.ne.s32.totalorder %s35, %s51
      %p53 = scmp.eq.s32.totalorder %s27, 0
      %p54 = por %p52, %p53
      %s56 = sadd.s32 %s55, 1
      %p59 = scmp.eq.s32.totalorder %s21, 7
      %p60 = scmp.ne.s32.totalorder %s55, %s57
      %p61 = scmp.eq.s32.totalorder %s21, 0
      %p62 = por %p60, %p61
      %p63 = scmp.ne.s32.totalorder %s55, %s57
      %p64 = scmp.eq.s32.totalorder %s26, 7
      %p65 = por %p63, %p64
      %p66 = scmp.ne.s32.totalorder %s57, %s58
      %p67 = scmp.eq.s32.totalorder %s26, 0
      %p68 = por %p66, %p67
      %p69 = scmp.ne.s32.totalorder %s57, %s58
      %p70 = scmp.eq.s32.totalorder %s27, 7
      %p71 = por %p69, %p70
      %p73 = scmp.ne.s32.totalorder %s58, %s72
      %p74 = scmp.eq.s32.totalorder %s27, 0
      %p75 = por %p73, %p74
      %s77 = sadd.s32 %s76, 1
      %p80 = scmp.eq.s32.totalorder %s21, 7
      %p81 = scmp.ne.s32.totalorder %s76, %s78
      %p82 = scmp.eq.s32.totalorder %s21, 0
      %p83 = por %p81, %p82
      %p84 = scmp.ne.s32.totalorder %s76, %s78
      %p85 = scmp.eq.s32.totalorder %s26, 7
      %p86 = por %p84, %p85
      %p87 = scmp.ne.s32.totalorder %s78, %s79
      %p88 = scmp.eq.s32.totalorder %s26, 0
      %p89 = por %p87, %p88
      %p90 = scmp.ne.s32.totalorder %s78, %s79
      %p91 = scmp.eq.s32.totalorder %s27, 7
      %p92 = por %p90, %p91
      %p94 = scmp.ne.s32.totalorder %s79, %s93
      %p95 = scmp.eq.s32.totalorder %s27, 0
      %p96 = por %p94, %p95
      %s98 = sadd.s32 %s97, 1
      %p101 = scmp.eq.s32.totalorder %s21, 7
      %p102 = scmp.ne.s32.totalorder %s97, %s99
      %p103 = scmp.eq.s32.totalorder %s21, 0
      %p104 = por %p102, %p103
      %p105 = scmp.ne.s32.totalorder %s97, %s99
      %p106 = scmp.eq.s32.totalorder %s26, 7
      %p107 = por %p105, %p106
      %p108 = scmp.ne.s32.totalorder %s99, %s100
      %p109 = scmp.eq.s32.totalorder %s26, 0
      %p110 = por %p108, %p109
      %p111 = scmp.ne.s32.totalorder %s99, %s100
      %p112 = scmp.eq.s32.totalorder %s27, 7
      %p113 = por %p111, %p112
      %p115 = scmp.ne.s32.totalorder %s100, %s114
      %p116 = scmp.eq.s32.totalorder %s27, 0
      %p117 = por %p115, %p116
      %s119 = sadd.s32 %s118, 1
      %p122 = scmp.eq.s32.totalorder %s21, 7
      %p123 = scmp.ne.s32.totalorder %s118, %s120
      %p124 = scmp.eq.s32.totalorder %s21, 0
      %p125 = por %p123, %p124
      %p126 = scmp.ne.s32.totalorder %s118, %s120
      %p127 = scmp.eq.s32.totalorder %s26, 7
      %p128 = por %p126, %p127
      %p129 = scmp.ne.s32.totalorder %s120, %s121
      %p130 = scmp.eq.s32.totalorder %s26, 0
      %p131 = por %p129, %p130
      %p132 = scmp.ne.s32.totalorder %s120, %s121
      %p133 = scmp.eq.s32.totalorder %s27, 7
      %p134 = por %p132, %p133
      %p136 = scmp.ne.s32.totalorder %s121, %s135
      %p137 = scmp.eq.s32.totalorder %s27, 0
      %p138 = por %p136, %p137
      %s140 = sadd.s32 %s139, 1
      %p143 = scmp.eq.s32.totalorder %s21, 7
      %p144 = scmp.ne.s32.totalorder %s139, %s141
      %p145 = scmp.eq.s32.totalorder %s21, 0
      %p146 = por %p144, %p145
      %p147 = scmp.ne.s32.totalorder %s139, %s141
      %p148 = scmp.eq.s32.totalorder %s26, 7
      %p149 = por %p147, %p148
      %p150 = scmp.ne.s32.totalorder %s141, %s142
      %p151 = scmp.eq.s32.totalorder %s26, 0
      %p152 = por %p150, %p151
      %p153 = scmp.ne.s32.totalorder %s141, %s142
      %p154 = scmp.eq.s32.totalorder %s27, 7
      %p155 = por %p153, %p154
      %p157 = scmp.ne.s32.totalorder %s142, %s156
      %p158 = scmp.eq.s32.totalorder %s27, 0
      %p159 = por %p157, %p158
      %s161 = sadd.s32 %s160, 1
      %p164 = scmp.eq.s32.totalorder %s21, 7
      %p165 = scmp.ne.s32.totalorder %s160, %s162
      %p166 = scmp.eq.s32.totalorder %s21, 0
      %p167 = por %p165, %p166
      %p168 = scmp.ne.s32.totalorder %s160, %s162
      %p169 = scmp.eq.s32.totalorder %s26, 7
      %p170 = por %p168, %p169
      %p171 = scmp.ne.s32.totalorder %s162, %s163
      %p172 = scmp.eq.s32.totalorder %s26, 0
      %p173 = por %p171, %p172
      %p174 = scmp.ne.s32.totalorder %s162, %s163
      %p175 = scmp.eq.s32.totalorder %s27, 7
      %p176 = por %p174, %p175
      %p178 = scmp.ne.s32.totalorder %s163, %s177
      %p179 = scmp.eq.s32.totalorder %s27, 0
      %p180 = por %p178, %p179
      %s181 = ssub.s32 %s21, %s28
      %p182 = scmp.eq.s32.totalorder %s181, 0
      %s184 = sadd.s32 %s183, 1
      %s185 = scalar_select %p182, %s183, %s184
      %p188 = pneg %p182
      %p189 = scmp.eq.s32.totalorder %s21, 7
      %p190 = por %p188, %p189
      %p191 = scmp.ne.s32.totalorder %s183, %s186
      %p192 = scmp.eq.s32.totalorder %s21, 0
      %p193 = por %p191, %p192
      %p194 = scmp.ne.s32.totalorder %s183, %s186
      %p195 = scmp.eq.s32.totalorder %s26, 7
      %p196 = por %p194, %p195
      %p197 = scmp.ne.s32.totalorder %s186, %s187
      %p198 = scmp.eq.s32.totalorder %s26, 0
      %p199 = por %p197, %p198
      %p200 = scmp.ne.s32.totalorder %s186, %s187
      %p201 = scmp.eq.s32.totalorder %s27, 7
      %p202 = por %p200, %p201
      %p204 = scmp.ne.s32.totalorder %s187, %s203
      %p205 = scmp.eq.s32.totalorder %s27, 0
      %p206 = por %p204, %p205
      %s208 = sadd.s32 %s207, 1
      %p211 = scmp.eq.s32.totalorder %s21, 7
      %p212 = scmp.ne.s32.totalorder %s207, %s209
      %p213 = scmp.eq.s32.totalorder %s21, 0
      %p214 = por %p212, %p213
      %p215 = scmp.ne.s32.totalorder %s207, %s209
      %p216 = scmp.eq.s32.totalorder %s26, 7
      %p217 = por %p215, %p216
      %p218 = scmp.ne.s32.totalorder %s209, %s210
      %p219 = scmp.eq.s32.totalorder %s26, 0
      %p220 = por %p218, %p219
      %p221 = scmp.ne.s32.totalorder %s209, %s210
      %p222 = scmp.eq.s32.totalorder %s27, 7
      %p223 = por %p221, %p222
      %p225 = scmp.ne.s32.totalorder %s210, %s224
      %p226 = scmp.eq.s32.totalorder %s27, 0
      %p227 = por %p225, %p226
      %p228 = scmp.le.s32.totalorder 1, %s21
      %p229 = scmp.lt.s32.totalorder %s21, 9
      %p230 = pnand %p228, %p229
      %p231 = pneg %p230
      // Predicated region
      $region9: #{tpu_custom_call.1} parent=5 // pred_check
        _
      $region10: #{tpu_custom_call.1} parent=5 // pred_check_branch
        %233 = sbr.rel (%p230) target = $region12
      $region11: #{tpu_custom_call.1} parent=5 // pred_region
        %s234 = ssub.s32 %s21, 1
        // Predicated region
        $region13: #{tpu_custom_call.1} parent=11 // pred_check
          %p235 = pneg %p68
        $region14: #{tpu_custom_call.1} parent=11 // pred_check_branch
          %237 = sbr.rel (%p235) target = $region16
        $region15: #{tpu_custom_call.1} parent=11 // pred_region
          %s239 = ssub.s32 2048, 2048
          %240 = vsyncadd [#allocation4], %s239
          %s241 = sshll.u32 [#allocation3], 4
          %s242 = int_to_ptr.vmem [resolvable:$true] %s241
          %247 = dma.hbm_to_vmem [thread:$0]  %s1, 2048, %s242, [#allocation4], 128, 128, 8
        $region16: #{tpu_custom_call.1} parent=11 // pred_fallthru
          _
        // Predicated region
        $region17: #{tpu_custom_call.1} parent=11 // pred_check
          %p248 = pneg %p89
        $region18: #{tpu_custom_call.1} parent=11 // pred_check_branch
          %250 = sbr.rel (%p248) target = $region20
        $region19: #{tpu_custom_call.1} parent=11 // pred_region
          _
        $region20: #{tpu_custom_call.1} parent=11 // pred_fallthru
          _
        // Predicated region
        $region21: #{tpu_custom_call.1} parent=11 // pred_check
          %p251 = pneg %p110
        $region22: #{tpu_custom_call.1} parent=11 // pred_check_branch
          %253 = sbr.rel (%p251) target = $region24
        $region23: #{tpu_custom_call.1} parent=11 // pred_region
          %s255 = ssub.s32 16384, 16384
          %256 = vsyncadd [#allocation7], %s255
          %s257 = sshll.u32 [#allocation6], 4
          %s258 = int_to_ptr.vmem [resolvable:$true] %s257
          %263 = dma.hbm_to_vmem [thread:$0]  %s3, 16384, %s258, [#allocation7], 512, 512, 32
        $region24: #{tpu_custom_call.1} parent=11 // pred_fallthru
          _
        // Predicated region
        $region25: #{tpu_custom_call.1} parent=11 // pred_check
          %p264 = pneg %p131
        $region26: #{tpu_custom_call.1} parent=11 // pred_check_branch
          %266 = sbr.rel (%p264) target = $region28
        $region27: #{tpu_custom_call.1} parent=11 // pred_region
          _
        $region28: #{tpu_custom_call.1} parent=11 // pred_fallthru
          _
        // Predicated region
        $region29: #{tpu_custom_call.1} parent=11 // pred_check
          %p267 = pneg %p152
        $region30: #{tpu_custom_call.1} parent=11 // pred_check_branch
          %269 = sbr.rel (%p267) target = $region32
        $region31: #{tpu_custom_call.1} parent=11 // pred_region
          %s271 = ssub.s32 2048, 2048
          %272 = vsyncadd [#allocation7], %s271
          %s273 = sshll.u32 [#allocation8], 4
          %s274 = int_to_ptr.vmem [resolvable:$true] %s273
          %279 = dma.hbm_to_vmem [thread:$0]  %s5, 2048, %s274, [#allocation7], 128, 128, 8
        $region32: #{tpu_custom_call.1} parent=11 // pred_fallthru
          _
        // Predicated region
        $region33: #{tpu_custom_call.1} parent=11 // pred_check
          %p280 = pneg %p173
        $region34: #{tpu_custom_call.1} parent=11 // pred_check_branch
          %282 = sbr.rel (%p280) target = $region36
        $region35: #{tpu_custom_call.1} parent=11 // pred_region
          _
        $region36: #{tpu_custom_call.1} parent=11 // pred_fallthru
          _
      $region12: #{tpu_custom_call.1} parent=5 // pred_fallthru
        _
      %p283 = scmp.lt.s32.totalorder %s21, 8
      // Predicated region
      $region37: #{tpu_custom_call.1} parent=5 // pred_check
        %p284 = pneg %p283
      $region38: #{tpu_custom_call.1} parent=5 // pred_check_branch
        %286 = sbr.rel (%p284) target = $region40
      $region39: #{tpu_custom_call.1} parent=5 // pred_region
        // Predicated region
        $region41: #{tpu_custom_call.1} parent=39 // pred_check
          %p287 = pneg %p41
        $region42: #{tpu_custom_call.1} parent=39 // pred_check_branch
          %289 = sbr.rel (%p287) target = $region44
        $region43: #{tpu_custom_call.1} parent=39 // pred_region
          %p290 = scmp.lt.s32.totalorder %s21, 7
          %s291 = scalar_select %p290, %s21, 7
          %s292 = smul.addr %s291, 8
          %s293 = scalar_lea.vmem %s0, %s292
        $region44: #{tpu_custom_call.1} parent=39 // pred_fallthru
          _
      $region40: #{tpu_custom_call.1} parent=5 // pred_fallthru
        _
      %p294 = scmp.le.s32.totalorder 1, %s21
      %p295 = scmp.lt.s32.totalorder %s21, 9
      %p296 = pnand %p294, %p295
      %p297 = pneg %p296
      // Predicated region
      $region45: #{tpu_custom_call.1} parent=5 // pred_check
        _
      $region46: #{tpu_custom_call.1} parent=5 // pred_check_branch
        %299 = sbr.rel (%p296) target = $region48
      $region47: #{tpu_custom_call.1} parent=5 // pred_region
        %s300 = ssub.s32 %s21, 1
        // Predicated region
        $region49: #{tpu_custom_call.1} parent=47 // pred_check
          %p301 = pneg %p68
        $region50: #{tpu_custom_call.1} parent=47 // pred_check_branch
          %303 = sbr.rel (%p301) target = $region52
        $region51: #{tpu_custom_call.1} parent=47 // pred_region
          %304 = dma.done [#allocation4], 2048
        $region52: #{tpu_custom_call.1} parent=47 // pred_fallthru
          _
        // Predicated region
        $region53: #{tpu_custom_call.1} parent=47 // pred_check
          %p305 = pneg %p110
        $region54: #{tpu_custom_call.1} parent=47 // pred_check_branch
          %307 = sbr.rel (%p305) target = $region56
        $region55: #{tpu_custom_call.1} parent=47 // pred_region
          %308 = dma.done [#allocation7], 16384
        $region56: #{tpu_custom_call.1} parent=47 // pred_fallthru
          _
        // Predicated region
        $region57: #{tpu_custom_call.1} parent=47 // pred_check
          %p309 = pneg %p152
        $region58: #{tpu_custom_call.1} parent=47 // pred_check_branch
          %311 = sbr.rel (%p309) target = $region60
        $region59: #{tpu_custom_call.1} parent=47 // pred_region
          %312 = dma.done [#allocation7], 2048
        $region60: #{tpu_custom_call.1} parent=47 // pred_fallthru
          _
        %p313 = scmp.lt.s32.totalorder %s26, 7
        %s314 = scalar_select %p313, %s26, 7
        %s315 = smul.addr %s314, 8
        %s316 = scalar_lea.vmem %s0, %s315
        %p317 = pneg %p47
        %p318 = pneg %p44
        %p319 = pneg %p68
        %p320 = pneg %p65
        %p321 = pneg %p89
        %p322 = pneg %p86
        %p323 = pneg %p110
        %p324 = pneg %p107
        %p325 = pneg %p131
        %p326 = pneg %p128
        %p327 = pneg %p152
        %p328 = pneg %p149
        %p329 = pneg %p173
        %p330 = pneg %p170
        %p331 = pneg %p199
        %p332 = pneg %p196
        %s333 = sand.u32 %s186, 1
        %s334 = scalar_lea.sflag [#allocation5], %s333
        %s335 = sand.u32 %s186, 1
        %s336 = smul.addr %s335, 8
        %s337 = scalar_lea.vmem [#allocation9], %s336
        %p338 = pneg %p220
        %p339 = pneg %p217
        %p340 = scmp.lt.s32.totalorder %s26, 7
        %s341 = scalar_select %p340, %s26, 7
        %s342 = smul.addr %s341, 8
        %s343 = scalar_lea.vmem %s0, %s342
        %p344 = scmp.eq.s32.totalorder %s26, 0
        // Predicated region
        $region61: #{tpu_custom_call.1} parent=47 // pred_check
          %p345 = pneg %p344
        $region62: #{tpu_custom_call.1} parent=47 // pred_check_branch
          %347 = sbr.rel (%p345) target = $region64
        $region63: #{tpu_custom_call.1} parent=47 // pred_region
          %v348 = vld [vmem:[%s2] sm:$0xff]
          %349 = vst [vmem:[#allocation2] sm:$0xff] %v348
        $region64: #{tpu_custom_call.1} parent=47 // pred_fallthru
          _
        %v350 = vld [vmem:[%s343] sm:$0xff]
        %v351 = vlaneseq
        %v352 = vand.u32 %v351, 127
        %353 = vset.pattern.permute.xlu0 0
        %354 = vperm.xlu0 %353, %v350
        %v355 = vpop.permute.xlu0 %354
        %vm356 = vcmp.eq.s32.totalorder %v352, %v355
        %v357 = vsel %vm356, 1, 0
        %v358 = vcvt.s32.f32 %v357
        %v359 = vld [vmem:[#allocation3] sm:$0xff]
        %v360 = vld [vmem:[#allocation3 + $0x8] sm:$0xff]
        %v361 = vld [vmem:[#allocation3 + $0x10] sm:$0xff]
        %v362 = vld [vmem:[#allocation3 + $0x18] sm:$0xff]
        %v363 = vld [vmem:[#allocation3 + $0x20] sm:$0xff]
        %v364 = vld [vmem:[#allocation3 + $0x28] sm:$0xff]
        %v365 = vld [vmem:[#allocation3 + $0x30] sm:$0xff]
        %v366 = vld [vmem:[#allocation3 + $0x38] sm:$0xff]
        %v367 = vld [vmem:[#allocation3 + $0x40] sm:$0xff]
        %v368 = vld [vmem:[#allocation3 + $0x48] sm:$0xff]
        %v369 = vld [vmem:[#allocation3 + $0x50] sm:$0xff]
        %v370 = vld [vmem:[#allocation3 + $0x58] sm:$0xff]
        %v371 = vld [vmem:[#allocation3 + $0x60] sm:$0xff]
        %v372 = vld [vmem:[#allocation3 + $0x68] sm:$0xff]
        %v373 = vld [vmem:[#allocation3 + $0x70] sm:$0xff]
        %v374 = vld [vmem:[#allocation3 + $0x78] sm:$0xff]
        %375 = vmatprep.subr.mxu0 0.0
        %376 = vmatpush1.msra.mxu0 %v359
        %377 = vmatprep.subr.mxu0 0.0
        %378 = vmatpush1.msra.mxu0 %v360
        %379 = vmatprep.subr.mxu0 0.0
        %380 = vmatpush1.msra.mxu0 %v361
        %381 = vmatprep.subr.mxu0 0.0
        %382 = vmatpush1.msra.mxu0 %v362
        %383 = vmatprep.subr.mxu0 0.0
        %384 = vmatpush1.msra.mxu0 %v363
        %385 = vmatprep.subr.mxu0 0.0
        %386 = vmatpush1.msra.mxu0 %v364
        %387 = vmatprep.subr.mxu0 0.0
        %388 = vmatpush1.msra.mxu0 %v365
        %389 = vmatprep.subr.mxu0 0.0
        %390 = vmatpush1.msra.mxu0 %v366
        %391 = vmatprep.subr.mxu0 0.0
        %392 = vmatpush1.msra.mxu0 %v367
        %393 = vmatprep.subr.mxu0 0.0
        %394 = vmatpush1.msra.mxu0 %v368
        %395 = vmatprep.subr.mxu0 0.0
        %396 = vmatpush1.msra.mxu0 %v369
        %397 = vmatprep.subr.mxu0 0.0
        %398 = vmatpush1.msra.mxu0 %v370
        %399 = vmatprep.subr.mxu0 0.0
        %400 = vmatpush1.msra.mxu0 %v371
        %401 = vmatprep.subr.mxu0 0.0
        %402 = vmatpush1.msra.mxu0 %v372
        %403 = vmatprep.subr.mxu0 0.0
        %404 = vmatpush1.msra.mxu0 %v373
        %405 = vmatprep.subr.mxu0 0.0
        %406 = vmatpush1.msra.mxu0 %v374
        %407 = vmatprep.subr.mxu0 0.0
        %408 = vmatpush1.msra.mxu0 0.0
        %409 = vmatprep.subr.mxu0 0.0
        %410 = vmatpush1.msra.mxu0 0.0
        %411 = vmatprep.subr.mxu0 0.0
        %412 = vmatpush1.msra.mxu0 0.0
        %413 = vmatprep.subr.mxu0 0.0
        %414 = vmatpush1.msra.mxu0 0.0
        %415 = vmatprep.subr.mxu0 0.0
        %416 = vmatpush1.msra.mxu0 0.0
        %417 = vmatprep.subr.mxu0 0.0
        %418 = vmatpush1.msra.mxu0 0.0
        %419 = vmatprep.subr.mxu0 0.0
        %420 = vmatpush1.msra.mxu0 0.0
        %421 = vmatprep.subr.mxu0 0.0
        %422 = vmatpush1.msra.mxu0 0.0
        %423 = vmatprep.subr.mxu0 0.0
        %424 = vmatpush1.msra.mxu0 0.0
        %425 = vmatprep.subr.mxu0 0.0
        %426 = vmatpush1.msra.mxu0 0.0
        %427 = vmatprep.subr.mxu0 0.0
        %428 = vmatpush1.msra.mxu0 0.0
        %429 = vmatprep.subr.mxu0 0.0
        %430 = vmatpush1.msra.mxu0 0.0
        %431 = vmatprep.subr.mxu0 0.0
        %432 = vmatpush1.msra.mxu0 0.0
        %433 = vmatprep.subr.mxu0 0.0
        %434 = vmatpush1.msra.mxu0 0.0
        %435 = vmatprep.subr.mxu0 0.0
        %436 = vmatpush1.msra.mxu0 0.0
        %437 = vmatprep.subr.mxu0 0.0
        %438 = vmatpush1.msra.mxu0 0.0
        %439 = vmatprep.mubr.f32.mxu0 0.0
        %440 = vmatmul.mubr.f32.gmra.mrb[0].mxu0 %v358
        %v441 = vpop.f32.mrb[0].mxu0
        %v442 = vadd.f32 0.0, %v441
        %v443 = vpop.f32.mrb[0].mxu0
        %444 = vdwg.mxu0
        %v445 = vmax.f32 %v442, 0.0
        %v446 = vld [vmem:[#allocation2] sm:$0xff]
        %v447 = vld [vmem:[#allocation6] sm:$0xff]
        %v448 = vld [vmem:[#allocation6 + $0x8] sm:$0xff]
        %v449 = vld [vmem:[#allocation6 + $0x10] sm:$0xff]
        %v450 = vld [vmem:[#allocation6 + $0x18] sm:$0xff]
        %v451 = vld [vmem:[#allocation6 + $0x20] sm:$0xff]
        %v452 = vld [vmem:[#allocation6 + $0x28] sm:$0xff]
        %v453 = vld [vmem:[#allocation6 + $0x30] sm:$0xff]
        %v454 = vld [vmem:[#allocation6 + $0x38] sm:$0xff]
        %v455 = vld [vmem:[#allocation6 + $0x40] sm:$0xff]
        %v456 = vld [vmem:[#allocation6 + $0x48] sm:$0xff]
        %v457 = vld [vmem:[#allocation6 + $0x50] sm:$0xff]
        %v458 = vld [vmem:[#allocation6 + $0x58] sm:$0xff]
        %v459 = vld [vmem:[#allocation6 + $0x60] sm:$0xff]
        %v460 = vld [vmem:[#allocation6 + $0x68] sm:$0xff]
        %v461 = vld [vmem:[#allocation6 + $0x70] sm:$0xff]
        %v462 = vld [vmem:[#allocation6 + $0x78] sm:$0xff]
        %v463 = vld [vmem:[#allocation6 + $0x80] sm:$0xff]
        %v464 = vld [vmem:[#allocation6 + $0x88] sm:$0xff]
        %v465 = vld [vmem:[#allocation6 + $0x90] sm:$0xff]
        %v466 = vld [vmem:[#allocation6 + $0x98] sm:$0xff]
        %v467 = vld [vmem:[#allocation6 + $0xa0] sm:$0xff]
        %v468 = vld [vmem:[#allocation6 + $0xa8] sm:$0xff]
        %v469 = vld [vmem:[#allocation6 + $0xb0] sm:$0xff]
        %v470 = vld [vmem:[#allocation6 + $0xb8] sm:$0xff]
        %v471 = vld [vmem:[#allocation6 + $0xc0] sm:$0xff]
        %v472 = vld [vmem:[#allocation6 + $0xc8] sm:$0xff]
        %v473 = vld [vmem:[#allocation6 + $0xd0] sm:$0xff]
        %v474 = vld [vmem:[#allocation6 + $0xd8] sm:$0xff]
        %v475 = vld [vmem:[#allocation6 + $0xe0] sm:$0xff]
        %v476 = vld [vmem:[#allocation6 + $0xe8] sm:$0xff]
        %v477 = vld [vmem:[#allocation6 + $0xf0] sm:$0xff]
        %v478 = vld [vmem:[#allocation6 + $0xf8] sm:$0xff]
        %v479 = vld [vmem:[#allocation6 + $0x100] sm:$0xff]
        %v480 = vld [vmem:[#allocation6 + $0x108] sm:$0xff]
        %v481 = vld [vmem:[#allocation6 + $0x110] sm:$0xff]
        %v482 = vld [vmem:[#allocation6 + $0x118] sm:$0xff]
        %v483 = vld [vmem:[#allocation6 + $0x120] sm:$0xff]
        %v484 = vld [vmem:[#allocation6 + $0x128] sm:$0xff]
        %v485 = vld [vmem:[#allocation6 + $0x130] sm:$0xff]
        %v486 = vld [vmem:[#allocation6 + $0x138] sm:$0xff]
        %v487 = vld [vmem:[#allocation6 + $0x140] sm:$0xff]
        %v488 = vld [vmem:[#allocation6 + $0x148] sm:$0xff]
        %v489 = vld [vmem:[#allocation6 + $0x150] sm:$0xff]
        %v490 = vld [vmem:[#allocation6 + $0x158] sm:$0xff]
        %v491 = vld [vmem:[#allocation6 + $0x160] sm:$0xff]
        %v492 = vld [vmem:[#allocation6 + $0x168] sm:$0xff]
        %v493 = vld [vmem:[#allocation6 + $0x170] sm:$0xff]
        %v494 = vld [vmem:[#allocation6 + $0x178] sm:$0xff]
        %v495 = vld [vmem:[#allocation6 + $0x180] sm:$0xff]
        %v496 = vld [vmem:[#allocation6 + $0x188] sm:$0xff]
        %v497 = vld [vmem:[#allocation6 + $0x190] sm:$0xff]
        %v498 = vld [vmem:[#allocation6 + $0x198] sm:$0xff]
        %v499 = vld [vmem:[#allocation6 + $0x1a0] sm:$0xff]
        %v500 = vld [vmem:[#allocation6 + $0x1a8] sm:$0xff]
        %v501 = vld [vmem:[#allocation6 + $0x1b0] sm:$0xff]
        %v502 = vld [vmem:[#allocation6 + $0x1b8] sm:$0xff]
        %v503 = vld [vmem:[#allocation6 + $0x1c0] sm:$0xff]
        %v504 = vld [vmem:[#allocation6 + $0x1c8] sm:$0xff]
        %v505 = vld [vmem:[#allocation6 + $0x1d0] sm:$0xff]
        %v506 = vld [vmem:[#allocation6 + $0x1d8] sm:$0xff]
        %v507 = vld [vmem:[#allocation6 + $0x1e0] sm:$0xff]
        %v508 = vld [vmem:[#allocation6 + $0x1e8] sm:$0xff]
        %v509 = vld [vmem:[#allocation6 + $0x1f0] sm:$0xff]
        %v510 = vld [vmem:[#allocation6 + $0x1f8] sm:$0xff]
        %v511 = vld [vmem:[#allocation6 + $0x200] sm:$0xff]
        %v512 = vld [vmem:[#allocation6 + $0x208] sm:$0xff]
        %v513 = vld [vmem:[#allocation6 + $0x210] sm:$0xff]
        %v514 = vld [vmem:[#allocation6 + $0x218] sm:$0xff]
        %v515 = vld [vmem:[#allocation6 + $0x220] sm:$0xff]
        %v516 = vld [vmem:[#allocation6 + $0x228] sm:$0xff]
        %v517 = vld [vmem:[#allocation6 + $0x230] sm:$0xff]
        %v518 = vld [vmem:[#allocation6 + $0x238] sm:$0xff]
        %v519 = vld [vmem:[#allocation6 + $0x240] sm:$0xff]
        %v520 = vld [vmem:[#allocation6 + $0x248] sm:$0xff]
        %v521 = vld [vmem:[#allocation6 + $0x250] sm:$0xff]
        %v522 = vld [vmem:[#allocation6 + $0x258] sm:$0xff]
        %v523 = vld [vmem:[#allocation6 + $0x260] sm:$0xff]
        %v524 = vld [vmem:[#allocation6 + $0x268] sm:$0xff]
        %v525 = vld [vmem:[#allocation6 + $0x270] sm:$0xff]
        %v526 = vld [vmem:[#allocation6 + $0x278] sm:$0xff]
        %v527 = vld [vmem:[#allocation6 + $0x280] sm:$0xff]
        %v528 = vld [vmem:[#allocation6 + $0x288] sm:$0xff]
        %v529 = vld [vmem:[#allocation6 + $0x290] sm:$0xff]
        %v530 = vld [vmem:[#allocation6 + $0x298] sm:$0xff]
        %v531 = vld [vmem:[#allocation6 + $0x2a0] sm:$0xff]
        %v532 = vld [vmem:[#allocation6 + $0x2a8] sm:$0xff]
        %v533 = vld [vmem:[#allocation6 + $0x2b0] sm:$0xff]
        %v534 = vld [vmem:[#allocation6 + $0x2b8] sm:$0xff]
        %v535 = vld [vmem:[#allocation6 + $0x2c0] sm:$0xff]
        %v536 = vld [vmem:[#allocation6 + $0x2c8] sm:$0xff]
        %v537 = vld [vmem:[#allocation6 + $0x2d0] sm:$0xff]
        %v538 = vld [vmem:[#allocation6 + $0x2d8] sm:$0xff]
        %v539 = vld [vmem:[#allocation6 + $0x2e0] sm:$0xff]
        %v540 = vld [vmem:[#allocation6 + $0x2e8] sm:$0xff]
        %v541 = vld [vmem:[#allocation6 + $0x2f0] sm:$0xff]
        %v542 = vld [vmem:[#allocation6 + $0x2f8] sm:$0xff]
        %v543 = vld [vmem:[#allocation6 + $0x300] sm:$0xff]
        %v544 = vld [vmem:[#allocation6 + $0x308] sm:$0xff]
        %v545 = vld [vmem:[#allocation6 + $0x310] sm:$0xff]
        %v546 = vld [vmem:[#allocation6 + $0x318] sm:$0xff]
        %v547 = vld [vmem:[#allocation6 + $0x320] sm:$0xff]
        %v548 = vld [vmem:[#allocation6 + $0x328] sm:$0xff]
        %v549 = vld [vmem:[#allocation6 + $0x330] sm:$0xff]
        %v550 = vld [vmem:[#allocation6 + $0x338] sm:$0xff]
        %v551 = vld [vmem:[#allocation6 + $0x340] sm:$0xff]
        %v552 = vld [vmem:[#allocation6 + $0x348] sm:$0xff]
        %v553 = vld [vmem:[#allocation6 + $0x350] sm:$0xff]
        %v554 = vld [vmem:[#allocation6 + $0x358] sm:$0xff]
        %v555 = vld [vmem:[#allocation6 + $0x360] sm:$0xff]
        %v556 = vld [vmem:[#allocation6 + $0x368] sm:$0xff]
        %v557 = vld [vmem:[#allocation6 + $0x370] sm:$0xff]
        %v558 = vld [vmem:[#allocation6 + $0x378] sm:$0xff]
        %v559 = vld [vmem:[#allocation6 + $0x380] sm:$0xff]
        %v560 = vld [vmem:[#allocation6 + $0x388] sm:$0xff]
        %v561 = vld [vmem:[#allocation6 + $0x390] sm:$0xff]
        %v562 = vld [vmem:[#allocation6 + $0x398] sm:$0xff]
        %v563 = vld [vmem:[#allocation6 + $0x3a0] sm:$0xff]
        %v564 = vld [vmem:[#allocation6 + $0x3a8] sm:$0xff]
        %v565 = vld [vmem:[#allocation6 + $0x3b0] sm:$0xff]
        %v566 = vld [vmem:[#allocation6 + $0x3b8] sm:$0xff]
        %v567 = vld [vmem:[#allocation6 + $0x3c0] sm:$0xff]
        %v568 = vld [vmem:[#allocation6 + $0x3c8] sm:$0xff]
        %v569 = vld [vmem:[#allocation6 + $0x3d0] sm:$0xff]
        %v570 = vld [vmem:[#allocation6 + $0x3d8] sm:$0xff]
        %v571 = vld [vmem:[#allocation6 + $0x3e0] sm:$0xff]
        %v572 = vld [vmem:[#allocation6 + $0x3e8] sm:$0xff]
        %v573 = vld [vmem:[#allocation6 + $0x3f0] sm:$0xff]
        %v574 = vld [vmem:[#allocation6 + $0x3f8] sm:$0xff]
        %v575 = vld [vmem:[%s4] sm:$0xf]
        %v577 = vlaneseq
        %v578 = vshrl.u32 %v577, 7
        %v579 = vsub.s32 0, %v578
        %v580 = vrot.slane %v575, %v579
        %v581 = vlaneseq
        %v582 = vshrl.u32 %v581, 7
        %v583 = vsub.s32 1, %v582
        %v584 = vrot.slane %v575, %v583
        %v585 = vlaneseq
        %v586 = vshrl.u32 %v585, 7
        %v587 = vsub.s32 2, %v586
        %v588 = vrot.slane %v575, %v587
        %v589 = vlaneseq
        %v590 = vshrl.u32 %v589, 7
        %v591 = vsub.s32 3, %v590
        %v592 = vrot.slane %v575, %v591
        %597 = vmatprep.subr.mxu0 %v448
        %598 = vmatpush1.msra.mxu0 %v447
        %599 = vmatprep.subr.mxu0 %v452
        %600 = vmatpush1.msra.mxu0 %v451
        %601 = vmatprep.subr.mxu0 %v456
        %602 = vmatpush1.msra.mxu0 %v455
        %603 = vmatprep.subr.mxu0 %v460
        %604 = vmatpush1.msra.mxu0 %v459
        %605 = vmatprep.subr.mxu0 %v464
        %606 = vmatpush1.msra.mxu0 %v463
        %607 = vmatprep.subr.mxu0 %v468
        %608 = vmatpush1.msra.mxu0 %v467
        %609 = vmatprep.subr.mxu0 %v472
        %610 = vmatpush1.msra.mxu0 %v471
        %611 = vmatprep.subr.mxu0 %v476
        %612 = vmatpush1.msra.mxu0 %v475
        %613 = vmatprep.subr.mxu0 %v480
        %614 = vmatpush1.msra.mxu0 %v479
        %615 = vmatprep.subr.mxu0 %v484
        %616 = vmatpush1.msra.mxu0 %v483
        %617 = vmatprep.subr.mxu0 %v488
        %618 = vmatpush1.msra.mxu0 %v487
        %619 = vmatprep.subr.mxu0 %v492
        %620 = vmatpush1.msra.mxu0 %v491
        %621 = vmatprep.subr.mxu0 %v496
        %622 = vmatpush1.msra.mxu0 %v495
        %623 = vmatprep.subr.mxu0 %v500
        %624 = vmatpush1.msra.mxu0 %v499
        %625 = vmatprep.subr.mxu0 %v504
        %626 = vmatpush1.msra.mxu0 %v503
        %627 = vmatprep.subr.mxu0 %v508
        %628 = vmatpush1.msra.mxu0 %v507
        %629 = vmatprep.subr.mxu0 %v512
        %630 = vmatpush1.msra.mxu0 %v511
        %631 = vmatprep.subr.mxu0 %v516
        %632 = vmatpush1.msra.mxu0 %v515
        %633 = vmatprep.subr.mxu0 %v520
        %634 = vmatpush1.msra.mxu0 %v519
        %635 = vmatprep.subr.mxu0 %v524
        %636 = vmatpush1.msra.mxu0 %v523
        %637 = vmatprep.subr.mxu0 %v528
        %638 = vmatpush1.msra.mxu0 %v527
        %639 = vmatprep.subr.mxu0 %v532
        %640 = vmatpush1.msra.mxu0 %v531
        %641 = vmatprep.subr.mxu0 %v536
        %642 = vmatpush1.msra.mxu0 %v535
        %643 = vmatprep.subr.mxu0 %v540
        %644 = vmatpush1.msra.mxu0 %v539
        %645 = vmatprep.subr.mxu0 %v544
        %646 = vmatpush1.msra.mxu0 %v543
        %647 = vmatprep.subr.mxu0 %v548
        %648 = vmatpush1.msra.mxu0 %v547
        %649 = vmatprep.subr.mxu0 %v552
        %650 = vmatpush1.msra.mxu0 %v551
        %651 = vmatprep.subr.mxu0 %v556
        %652 = vmatpush1.msra.mxu0 %v555
        %653 = vmatprep.subr.mxu0 %v560
        %654 = vmatpush1.msra.mxu0 %v559
        %655 = vmatprep.subr.mxu0 %v564
        %656 = vmatpush1.msra.mxu0 %v563
        %657 = vmatprep.subr.mxu0 %v568
        %658 = vmatpush1.msra.mxu0 %v567
        %659 = vmatprep.subr.mxu0 %v572
        %660 = vmatpush1.msra.mxu0 %v571
        %661 = vmatprep.mubr.f32.mxu0 %v446
        %662 = vmatmul.mubr.f32.gmra.mrb[0].mxu0 %v445
        %v663 = vpop.f32.mrb[0].mxu0
        %v664 = vadd.f32 %v580, %v663
        %v665 = vpop.f32.mrb[0].mxu0
        %v666 = vadd.f32 %v584, %v665
        %667 = vdwg.mxu0
        %668 = vmatprep.subr.mxu0 %v450
        %669 = vmatpush1.msra.mxu0 %v449
        %670 = vmatprep.subr.mxu0 %v454
        %671 = vmatpush1.msra.mxu0 %v453
        %672 = vmatprep.subr.mxu0 %v458
        %673 = vmatpush1.msra.mxu0 %v457
        %674 = vmatprep.subr.mxu0 %v462
        %675 = vmatpush1.msra.mxu0 %v461
        %676 = vmatprep.subr.mxu0 %v466
        %677 = vmatpush1.msra.mxu0 %v465
        %678 = vmatprep.subr.mxu0 %v470
        %679 = vmatpush1.msra.mxu0 %v469
        %680 = vmatprep.subr.mxu0 %v474
        %681 = vmatpush1.msra.mxu0 %v473
        %682 = vmatprep.subr.mxu0 %v478
        %683 = vmatpush1.msra.mxu0 %v477
        %684 = vmatprep.subr.mxu0 %v482
        %685 = vmatpush1.msra.mxu0 %v481
        %686 = vmatprep.subr.mxu0 %v486
        %687 = vmatpush1.msra.mxu0 %v485
        %688 = vmatprep.subr.mxu0 %v490
        %689 = vmatpush1.msra.mxu0 %v489
        %690 = vmatprep.subr.mxu0 %v494
        %691 = vmatpush1.msra.mxu0 %v493
        %692 = vmatprep.subr.mxu0 %v498
        %693 = vmatpush1.msra.mxu0 %v497
        %694 = vmatprep.subr.mxu0 %v502
        %695 = vmatpush1.msra.mxu0 %v501
        %696 = vmatprep.subr.mxu0 %v506
        %697 = vmatpush1.msra.mxu0 %v505
        %698 = vmatprep.subr.mxu0 %v510
        %699 = vmatpush1.msra.mxu0 %v509
        %700 = vmatprep.subr.mxu0 %v514
        %701 = vmatpush1.msra.mxu0 %v513
        %702 = vmatprep.subr.mxu0 %v518
        %703 = vmatpush1.msra.mxu0 %v517
        %704 = vmatprep.subr.mxu0 %v522
        %705 = vmatpush1.msra.mxu0 %v521
        %706 = vmatprep.subr.mxu0 %v526
        %707 = vmatpush1.msra.mxu0 %v525
        %708 = vmatprep.subr.mxu0 %v530
        %709 = vmatpush1.msra.mxu0 %v529
        %710 = vmatprep.subr.mxu0 %v534
        %711 = vmatpush1.msra.mxu0 %v533
        %712 = vmatprep.subr.mxu0 %v538
        %713 = vmatpush1.msra.mxu0 %v537
        %714 = vmatprep.subr.mxu0 %v542
        %715 = vmatpush1.msra.mxu0 %v541
        %716 = vmatprep.subr.mxu0 %v546
        %717 = vmatpush1.msra.mxu0 %v545
        %718 = vmatprep.subr.mxu0 %v550
        %719 = vmatpush1.msra.mxu0 %v549
        %720 = vmatprep.subr.mxu0 %v554
        %721 = vmatpush1.msra.mxu0 %v553
        %722 = vmatprep.subr.mxu0 %v558
        %723 = vmatpush1.msra.mxu0 %v557
        %724 = vmatprep.subr.mxu0 %v562
        %725 = vmatpush1.msra.mxu0 %v561
        %726 = vmatprep.subr.mxu0 %v566
        %727 = vmatpush1.msra.mxu0 %v565
        %728 = vmatprep.subr.mxu0 %v570
        %729 = vmatpush1.msra.mxu0 %v569
        %730 = vmatprep.subr.mxu0 %v574
        %731 = vmatpush1.msra.mxu0 %v573
        %732 = vmatprep.mubr.f32.mxu0 %v446
        %733 = vmatmul.mubr.f32.gmra.mrb[0].mxu0 %v445
        %v734 = vpop.f32.mrb[0].mxu0
        %v735 = vadd.f32 %v588, %v734
        %v736 = vpop.f32.mrb[0].mxu0
        %v737 = vadd.f32 %v592, %v736
        %738 = vdwg.mxu0
        %v739 = vxor.u32 %v664, 2147483648
        %v740 = vmul.f32 %v739, 1.442695
        %v741 = vpow.pop %v740
        %v742 = vadd.f32 %v741, 1.0
        %v743 = vrcp.pop %v742
        %v744 = vmul.f32 1.0, %v743
        %v745 = vxor.u32 %v666, 2147483648
        %v746 = vmul.f32 %v745, 1.442695
        %v747 = vpow.pop %v746
        %v748 = vadd.f32 %v747, 1.0
        %v749 = vrcp.pop %v748
        %v750 = vmul.f32 1.0, %v749
        %v751 = vmul.f32 %v744, %v737
        %v752 = vadd.f32 %v735, %v751
        %v753 = vtanh.pop %v752
        %v754 = vsub.f32 1.0, %v750
        %v755 = vmul.f32 %v754, %v753
        %v756 = vmul.f32 %v750, %v446
        %v757 = vadd.f32 %v755, %v756
        %758 = vst [vmem:[#allocation2] sm:$0xff] %v757
        %759 = vst [vmem:[#allocation10] sm:$0xff] %v757
        %v760 = vld [vmem:[#allocation8] sm:$0xff]
        %v761 = vld [vmem:[#allocation8 + $0x8] sm:$0xff]
        %v762 = vld [vmem:[#allocation8 + $0x10] sm:$0xff]
        %v763 = vld [vmem:[#allocation8 + $0x18] sm:$0xff]
        %v764 = vld [vmem:[#allocation8 + $0x20] sm:$0xff]
        %v765 = vld [vmem:[#allocation8 + $0x28] sm:$0xff]
        %v766 = vld [vmem:[#allocation8 + $0x30] sm:$0xff]
        %v767 = vld [vmem:[#allocation8 + $0x38] sm:$0xff]
        %v768 = vld [vmem:[#allocation8 + $0x40] sm:$0xff]
        %v769 = vld [vmem:[#allocation8 + $0x48] sm:$0xff]
        %v770 = vld [vmem:[#allocation8 + $0x50] sm:$0xff]
        %v771 = vld [vmem:[#allocation8 + $0x58] sm:$0xff]
        %v772 = vld [vmem:[#allocation8 + $0x60] sm:$0xff]
        %v773 = vld [vmem:[#allocation8 + $0x68] sm:$0xff]
        %v774 = vld [vmem:[#allocation8 + $0x70] sm:$0xff]
        %v775 = vld [vmem:[#allocation8 + $0x78] sm:$0xff]
        %v776 = vld [vmem:[%s6] sm:$0x1]
        %v778 = vlaneseq
        %v779 = vshrl.u32 %v778, 7
        %v780 = vsub.s32 0, %v779
        %v781 = vrot.slane %v776, %v780
        %783 = vmatprep.subr.mxu0 0.0
        %784 = vmatpush1.msra.mxu0 %v760
        %785 = vmatprep.subr.mxu0 0.0
        %786 = vmatpush1.msra.mxu0 %v761
        %787 = vmatprep.subr.mxu0 0.0
        %788 = vmatpush1.msra.mxu0 %v762
        %789 = vmatprep.subr.mxu0 0.0
        %790 = vmatpush1.msra.mxu0 %v763
        %791 = vmatprep.subr.mxu0 0.0
        %792 = vmatpush1.msra.mxu0 %v764
        %793 = vmatprep.subr.mxu0 0.0
        %794 = vmatpush1.msra.mxu0 %v765
        %795 = vmatprep.subr.mxu0 0.0
        %796 = vmatpush1.msra.mxu0 %v766
        %797 = vmatprep.subr.mxu0 0.0
        %798 = vmatpush1.msra.mxu0 %v767
        %799 = vmatprep.subr.mxu0 0.0
        %800 = vmatpush1.msra.mxu0 %v768
        %801 = vmatprep.subr.mxu0 0.0
        %802 = vmatpush1.msra.mxu0 %v769
        %803 = vmatprep.subr.mxu0 0.0
        %804 = vmatpush1.msra.mxu0 %v770
        %805 = vmatprep.subr.mxu0 0.0
        %806 = vmatpush1.msra.mxu0 %v771
        %807 = vmatprep.subr.mxu0 0.0
        %808 = vmatpush1.msra.mxu0 %v772
        %809 = vmatprep.subr.mxu0 0.0
        %810 = vmatpush1.msra.mxu0 %v773
        %811 = vmatprep.subr.mxu0 0.0
        %812 = vmatpush1.msra.mxu0 %v774
        %813 = vmatprep.subr.mxu0 0.0
        %814 = vmatpush1.msra.mxu0 %v775
        %815 = vmatprep.subr.mxu0 0.0
        %816 = vmatpush1.msra.mxu0 0.0
        %817 = vmatprep.subr.mxu0 0.0
        %818 = vmatpush1.msra.mxu0 0.0
        %819 = vmatprep.subr.mxu0 0.0
        %820 = vmatpush1.msra.mxu0 0.0
        %821 = vmatprep.subr.mxu0 0.0
        %822 = vmatpush1.msra.mxu0 0.0
        %823 = vmatprep.subr.mxu0 0.0
        %824 = vmatpush1.msra.mxu0 0.0
        %825 = vmatprep.subr.mxu0 0.0
        %826 = vmatpush1.msra.mxu0 0.0
        %827 = vmatprep.subr.mxu0 0.0
        %828 = vmatpush1.msra.mxu0 0.0
        %829 = vmatprep.subr.mxu0 0.0
        %830 = vmatpush1.msra.mxu0 0.0
        %831 = vmatprep.subr.mxu0 0.0
        %832 = vmatpush1.msra.mxu0 0.0
        %833 = vmatprep.subr.mxu0 0.0
        %834 = vmatpush1.msra.mxu0 0.0
        %835 = vmatprep.subr.mxu0 0.0
        %836 = vmatpush1.msra.mxu0 0.0
        %837 = vmatprep.subr.mxu0 0.0
        %838 = vmatpush1.msra.mxu0 0.0
        %839 = vmatprep.subr.mxu0 0.0
        %840 = vmatpush1.msra.mxu0 0.0
        %841 = vmatprep.subr.mxu0 0.0
        %842 = vmatpush1.msra.mxu0 0.0
        %843 = vmatprep.subr.mxu0 0.0
        %844 = vmatpush1.msra.mxu0 0.0
        %845 = vmatprep.subr.mxu0 0.0
        %846 = vmatpush1.msra.mxu0 0.0
        %847 = vmatprep.mubr.f32.mxu0 0.0
        %848 = vmatmul.mubr.f32.gmra.mrb[0].mxu0 %v757
        %v849 = vpop.f32.mrb[0].mxu0
        %v850 = vadd.f32 %v781, %v849
        %v851 = vpop.f32.mrb[0].mxu0
        %852 = vdwg.mxu0
        %853 = vmax.xlane.f32.xlu0 %v850
        %v854 = vpop.xlane.xlu0 %853
        %v855 = vsub.f32 %v850, %v854
        %v856 = vmul.f32 %v855, 1.442695
        %v857 = vpow.pop %v856
        %858 = vadd.xlane.f32.xlu0 %v857
        %v859 = vpop.xlane.xlu0 %858
        %v860 = vlog2.pop %v859
        %v861 = vmul.f32 %v860, 0.6931472
        %v862 = vsub.f32 %v855, %v861
        %863 = vst [vmem:[%s337] sm:$0xff] %v862
        %s864 = sand.u32 %s186, 1
        %s865 = scalar_lea.sflag [#allocation5], %s864
        %s866 = sand.u32 %s186, 1
        %s867 = smul.addr %s866, 8
        %s868 = scalar_lea.vmem [#allocation9], %s867
        // Predicated region
        $region65: #{tpu_custom_call.1} parent=47 // pred_check
          %p869 = pneg %p196
        $region66: #{tpu_custom_call.1} parent=47 // pred_check_branch
          %871 = sbr.rel (%p869) target = $region68
        $region67: #{tpu_custom_call.1} parent=47 // pred_region
          %s873 = ssub.s32 128, 128
          %874 = vsyncadd %s865, %s873
          %s875 = smul.addr %s26, 128
          %s876 = scalar_lea.hbm %s7, %s875
          %s878 = sshll.u32 %s868, 4
          %s879 = int_to_ptr.vmem [resolvable:$true] %s878
          %881 = dma.vmem_to_hbm [thread:$0]  %s879, 128, %s876, %s865
        $region68: #{tpu_custom_call.1} parent=47 // pred_fallthru
          _
        // Predicated region
        $region69: #{tpu_custom_call.1} parent=47 // pred_check
          %p882 = pneg %p217
        $region70: #{tpu_custom_call.1} parent=47 // pred_check_branch
          %884 = sbr.rel (%p882) target = $region72
        $region71: #{tpu_custom_call.1} parent=47 // pred_region
          %s886 = ssub.s32 128, 128
          %887 = vsyncadd [#allocation11], %s886
          %s889 = sshll.u32 [#allocation10], 4
          %s890 = int_to_ptr.vmem [resolvable:$true] %s889
          %892 = dma.vmem_to_hbm [thread:$0]  %s890, 128, %s8, [#allocation11]
        $region72: #{tpu_custom_call.1} parent=47 // pred_fallthru
          _
        // Predicated region
        $region73: #{tpu_custom_call.1} parent=47 // pred_check
          %p893 = pneg %p217
        $region74: #{tpu_custom_call.1} parent=47 // pred_check_branch
          %895 = sbr.rel (%p893) target = $region76
        $region75: #{tpu_custom_call.1} parent=47 // pred_region
          %896 = dma.done [#allocation11], 128
        $region76: #{tpu_custom_call.1} parent=47 // pred_fallthru
          _
      $region48: #{tpu_custom_call.1} parent=5 // pred_fallthru
        _
      %p897 = scmp.le.s32.totalorder 2, %s21
      // Predicated region
      $region77: #{tpu_custom_call.1} parent=5 // pred_check
        %p898 = pneg %p897
      $region78: #{tpu_custom_call.1} parent=5 // pred_check_branch
        %900 = sbr.rel (%p898) target = $region80
      $region79: #{tpu_custom_call.1} parent=5 // pred_region
        %s901 = ssub.s32 %s21, 2
        // Predicated region
        $region81: #{tpu_custom_call.1} parent=79 // pred_check
          %p902 = pneg %p202
        $region82: #{tpu_custom_call.1} parent=79 // pred_check_branch
          %904 = sbr.rel (%p902) target = $region84
        $region83: #{tpu_custom_call.1} parent=79 // pred_region
          %s905 = sand.u32 %s187, 1
          %s906 = scalar_lea.sflag [#allocation5], %s905
          %s907 = sand.u32 %s187, 1
          %s908 = smul.addr %s907, 8
          %s909 = scalar_lea.vmem [#allocation9], %s908
          %910 = dma.done %s906, 128
        $region84: #{tpu_custom_call.1} parent=79 // pred_fallthru
          _
      $region80: #{tpu_custom_call.1} parent=5 // pred_fallthru
        _
    $region6: #{tpu_custom_call.1} parent=1 // loop_footer
      %s25 = sadd.s32 1, %s21
    $region7: #{tpu_custom_call.1} parent=1 // loop_footer_branch
      %20 = sbr.rel target = $region3
    $region8: #{tpu_custom_call.1} parent=1 // loop_exit
      _
    %911 = vsyncpa [#allocation4], 1
    %s912 = scalar_lea.sflag [#allocation4], 1
    %913 = vsyncpa %s912, 1
    %914 = vsyncpa [#allocation7], 1
    %915 = vsyncpa [#allocation5], 1
    %s916 = scalar_lea.sflag [#allocation5], 1
    %917 = vsyncpa %s916, 1
    %918 = vsyncpa [#allocation11], 1

</llo_original>
